<compile_context>
chip_gen: v6e
topology: v6e:2x2x1
jax: 0.10.0
libtpu: 0.0.40
codegen_flags: <defaults>
</compile_context>

<pallas_src>
import functools

import jax
import jax.numpy as jnp
from jax import lax
from jax.experimental import pallas as pl
from jax.experimental.pallas import tpu as pltpu

_OUT_PAD = 128  # lane-dense output width (>= action_size + 1)


def _layernorm(v, w, b, eps=1e-5):
    # One-pass statistics: both reductions depend only on v, so they can be
    # issued back-to-back into the XLU instead of serializing mean -> var.
    n = v.shape[1]
    s1 = jnp.sum(v, axis=1, keepdims=True)
    s2 = jnp.sum(v * v, axis=1, keepdims=True)
    mu = s1 * (1.0 / n)
    var = s2 * (1.0 / n) - mu * mu
    return (v - mu) * lax.rsqrt(var + eps) * w + b


def _prelu(v, alpha):
    return jnp.where(v >= 0, v, alpha * v)


def actor_critic_kernel(
    # scalar PReLU alphas (SMEM)
    a_net_ref, a_act_ref, a_cri_ref,
    # tensors (VMEM)
    x_ref,
    ln0_w_ref, ln0_b_ref,
    w1_ref, b1_ref,
    w_ac1_ref, b_ac1_ref,
    lna_w_ref, lna_b_ref, lnc_w_ref, lnc_b_ref,
    w2_ref, b2_ref,
    # output: single lane-dense (B, 128) slab = [logits | value | zero pad]
    z_ref,
):
    H = w1_ref.shape[1]

    x = x_ref[...].astype(jnp.float32)

    # F.normalize(x, dim=1): x * rsqrt(max(||x||^2, 1e-24)) == x / max(||x||, 1e-12)
    s = jnp.sum(x * x, axis=1, keepdims=True)
    x = x * lax.rsqrt(jnp.maximum(s, 1e-24))

    # ---- net: LayerNorm -> Linear -> PReLU ----
    x = _layernorm(x, ln0_w_ref[...], ln0_b_ref[...])
    h = jnp.dot(x.astype(jnp.bfloat16), w1_ref[...],
                preferred_element_type=jnp.float32) + b1_ref[...]
    h = _prelu(h, a_net_ref[0])

    # ---- fused actor|critic first linears: one H -> 2H GEMM ----
    y = jnp.dot(h.astype(jnp.bfloat16), w_ac1_ref[...],
                preferred_element_type=jnp.float32) + b_ac1_ref[...]
    a = y[:, :H]   # actor half  (static slice at a 128-lane boundary: free)
    c = y[:, H:]   # critic half

    a = _prelu(_layernorm(a, lna_w_ref[...], lna_b_ref[...]), a_act_ref[0])
    c = _prelu(_layernorm(c, lnc_w_ref[...], lnc_b_ref[...]), a_cri_ref[0])

    # ---- fused final projections: block-diagonal (2H, 128) GEMM ----
    ac = jnp.concatenate([a, c], axis=1)
    z = jnp.dot(ac.astype(jnp.bfloat16), w2_ref[...],
                preferred_element_type=jnp.float32) + b2_ref[...]

    z_ref[...] = z.astype(z_ref.dtype)   # single unmasked 128-lane-wide store


def fuse_params(p):
    """Build the fused / bf16-cast parameter set consumed by the kernel."""
    H = p["w1"].shape[1]
    A = p["wa2"].shape[1]

    # actor|critic first linears side-by-side: (H, 2H)
    w_ac1 = jnp.concatenate([p["wa1"], p["wc1"]], axis=1)
    b_ac1 = jnp.concatenate([p["ba1"], p["bc1"]], axis=1)

    # block-diagonal final projection into a lane-dense 128-wide slab:
    #   columns [0:A)      <- actor head (from the first H rows)
    #   column  [A:A+1)    <- critic head (from the last H rows)
    #   remaining columns  <- zero padding
    w2 = jnp.zeros((2 * H, _OUT_PAD), jnp.float32)
    w2 = w2.at[:H, :A].set(p["wa2"])
    w2 = w2.at[H:, A:A + 1].set(p["wc2"])
    b2 = jnp.zeros((1, _OUT_PAD), jnp.float32)
    b2 = b2.at[:, :A].set(p["ba2"])
    b2 = b2.at[:, A:A + 1].set(p["bc2"])

    return dict(
        a_net=p["a_net"], a_act=p["a_act"], a_cri=p["a_cri"],
        ln0_w=p["ln0_w"], ln0_b=p["ln0_b"],
        w1=p["w1"].astype(jnp.bfloat16), b1=p["b1"],
        w_ac1=w_ac1.astype(jnp.bfloat16), b_ac1=b_ac1,
        lna_w=p["lna_w"], lna_b=p["lna_b"],
        lnc_w=p["lnc_w"], lnc_b=p["lnc_b"],
        w2=w2.astype(jnp.bfloat16), b2=b2,
    )


@functools.partial(jax.jit, static_argnames=("num_actions",))
def actor_critic_forward(x, fp, num_actions):
    B = x.shape[0]

    smem_spec = pl.BlockSpec(memory_space=pltpu.MemorySpace.SMEM)
    vmem_spec = pl.BlockSpec(memory_space=pltpu.MemorySpace.VMEM)

    scalar_args = (fp["a_net"], fp["a_act"], fp["a_cri"])
    tensor_args = (
        x,
        fp["ln0_w"], fp["ln0_b"],
        fp["w1"], fp["b1"],
        fp["w_ac1"], fp["b_ac1"],
        fp["lna_w"], fp["lna_b"], fp["lnc_w"], fp["lnc_b"],
        fp["w2"], fp["b2"],
    )

    z = pl.pallas_call(
        actor_critic_kernel,
        out_shape=jax.ShapeDtypeStruct((B, _OUT_PAD), jnp.float32),
        in_specs=[smem_spec] * len(scalar_args) + [vmem_spec] * len(tensor_args),
        out_specs=vmem_spec,
    )(*scalar_args, *tensor_args)

    logits = z[:, :num_actions]
    values = z[:, num_actions:num_actions + 1]
    return logits, values


def init_params(key, obs_size, hidden_size, action_size):
    """Deterministic synthetic parameters (shapes match the PyTorch module)."""
    ks = jax.random.split(key, 8)

    def linear(k, fan_in, fan_out):
        # PyTorch nn.Linear default: U(-1/sqrt(fan_in), 1/sqrt(fan_in))
        bound = 1.0 / jnp.sqrt(fan_in)
        kw, kb = jax.random.split(k)
        w = jax.random.uniform(kw, (fan_in, fan_out), jnp.float32, -bound, bound)
        b = jax.random.uniform(kb, (1, fan_out), jnp.float32, -bound, bound)
        return w, b

    w1, b1 = linear(ks[0], obs_size, hidden_size)
    wa1, ba1 = linear(ks[1], hidden_size, hidden_size)
    wa2, ba2 = linear(ks[2], hidden_size, action_size)
    wc1, bc1 = linear(ks[3], hidden_size, hidden_size)
    wc2, bc2 = linear(ks[4], hidden_size, 1)

    return dict(
        ln0_w=jnp.ones((1, obs_size), jnp.float32),
        ln0_b=jnp.zeros((1, obs_size), jnp.float32),
        w1=w1, b1=b1,
        a_net=jnp.full((1,), 0.25, jnp.float32),   # PReLU default init
        wa1=wa1, ba1=ba1,
        lna_w=jnp.ones((1, hidden_size), jnp.float32),
        lna_b=jnp.zeros((1, hidden_size), jnp.float32),
        a_act=jnp.full((1,), 0.25, jnp.float32),
        wa2=wa2, ba2=ba2,
        wc1=wc1, bc1=bc1,
        lnc_w=jnp.ones((1, hidden_size), jnp.float32),
        lnc_b=jnp.zeros((1, hidden_size), jnp.float32),
        a_cri=jnp.full((1,), 0.25, jnp.float32),
        wc2=wc2, bc2=bc2,
    )


def reference_forward(x, p):
    """Pure-JAX reference mirroring the PyTorch forward, with the same bf16
    cast at the dot boundaries that the kernel uses (f32 accumulation)."""

    def bdot(a, w):
        return jnp.dot(a.astype(jnp.bfloat16), w.astype(jnp.bfloat16),
                       preferred_element_type=jnp.float32)

    def ln(v, w, b, eps=1e-5):
        n = v.shape[1]
        s1 = jnp.sum(v, 1, keepdims=True)
        s2 = jnp.sum(v * v, 1, keepdims=True)
        mu = s1 / n
        var = s2 / n - mu * mu
        return (v - mu) * lax.rsqrt(var + eps) * w + b

    def pr(v, a):
        return jnp.where(v >= 0, v, a * v)

    x = x * lax.rsqrt(jnp.maximum(jnp.sum(x * x, 1, keepdims=True), 1e-24))
    h = pr(bdot(ln(x, p["ln0_w"], p["ln0_b"]), p["w1"]) + p["b1"], p["a_net"][0])
    a = pr(ln(bdot(h, p["wa1"]) + p["ba1"], p["lna_w"], p["lna_b"]), p["a_act"][0])
    logits = bdot(a, p["wa2"]) + p["ba2"]
    c = pr(ln(bdot(h, p["wc1"]) + p["bc1"], p["lnc_w"], p["lnc_b"]), p["a_cri"][0])
    values = bdot(c, p["wc2"]) + p["bc2"]
    return logits, values


if __name__ == "__main__":
    # Small shapes consistent with the module (obs = flat grid, 4 snake actions).
    BATCH, OBS, HIDDEN, ACTIONS = 8, 256, 128, 4

    key = jax.random.PRNGKey(0)
    kx, kp = jax.random.split(key)
    x = jax.random.normal(kx, (BATCH, OBS), jnp.float32)
    params = init_params(kp, OBS, HIDDEN, ACTIONS)
    fused = fuse_params(params)

    logits, values = actor_critic_forward(x, fused, ACTIONS)
    jax.block_until_ready((logits, values))

    ref_logits, ref_values = reference_forward(x, params)
    assert logits.shape == (BATCH, ACTIONS) and values.shape == (BATCH, 1)
    assert jnp.allclose(logits, ref_logits, atol=2e-3, rtol=2e-3)
    assert jnp.allclose(values, ref_values, atol=2e-3, rtol=2e-3)

    print("KERNEL_OK")
</pallas_src>

<mosaic_0001>
module attributes {stable_mosaic.version = 11 : i64} {
  func.func @actor_critic_kernel(%arg0: memref<1xf32, #tpu.memory_space<smem>>, %arg1: memref<1xf32, #tpu.memory_space<smem>>, %arg2: memref<1xf32, #tpu.memory_space<smem>>, %arg3: memref<8x256xf32, #tpu.memory_space<vmem>>, %arg4: memref<1x256xf32, #tpu.memory_space<vmem>>, %arg5: memref<1x256xf32, #tpu.memory_space<vmem>>, %arg6: memref<256x128xbf16, #tpu.memory_space<vmem>>, %arg7: memref<1x128xf32, #tpu.memory_space<vmem>>, %arg8: memref<128x256xbf16, #tpu.memory_space<vmem>>, %arg9: memref<1x256xf32, #tpu.memory_space<vmem>>, %arg10: memref<1x128xf32, #tpu.memory_space<vmem>>, %arg11: memref<1x128xf32, #tpu.memory_space<vmem>>, %arg12: memref<1x128xf32, #tpu.memory_space<vmem>>, %arg13: memref<1x128xf32, #tpu.memory_space<vmem>>, %arg14: memref<256x128xbf16, #tpu.memory_space<vmem>>, %arg15: memref<1x128xf32, #tpu.memory_space<vmem>>, %arg16: memref<8x128xf32, #tpu.memory_space<vmem>>) attributes {dimension_semantics = [], scalar_prefetch = 0 : i64, scratch_operands = 0 : i64, tpu.core_type = #tpu.core_type<tc>} {
    %c0 = arith.constant 0 : index
    %c0_0 = arith.constant 0 : index
    %0 = vector.load %arg3[%c0, %c0_0] : memref<8x256xf32, #tpu.memory_space<vmem>>, vector<8x256xf32>
    %1 = arith.mulf %0, %0 : vector<8x256xf32>
    %cst = arith.constant dense<0.000000e+00> : vector<8xf32>
    %2 = vector.multi_reduction <add>, %1, %cst [1] : vector<8x256xf32> to vector<8xf32>
    %3 = vector.shape_cast %2 : vector<8xf32> to vector<8x1xf32>
    %cst_1 = arith.constant 1.000000e-24 : f32
    %4 = vector.broadcast %cst_1 : f32 to vector<8x1xf32>
    %5 = arith.maximumf %3, %4 : vector<8x1xf32>
    %6 = math.rsqrt %5 : vector<8x1xf32>
    %7 = vector.broadcast %6 : vector<8x1xf32> to vector<8x256xf32>
    %8 = arith.mulf %0, %7 : vector<8x256xf32>
    %c0_2 = arith.constant 0 : index
    %c0_3 = arith.constant 0 : index
    %9 = vector.load %arg4[%c0_2, %c0_3] : memref<1x256xf32, #tpu.memory_space<vmem>>, vector<1x256xf32>
    %c0_4 = arith.constant 0 : index
    %c0_5 = arith.constant 0 : index
    %10 = vector.load %arg5[%c0_4, %c0_5] : memref<1x256xf32, #tpu.memory_space<vmem>>, vector<1x256xf32>
    %cst_6 = arith.constant dense<0.000000e+00> : vector<8xf32>
    %11 = vector.multi_reduction <add>, %8, %cst_6 [1] : vector<8x256xf32> to vector<8xf32>
    %12 = vector.shape_cast %11 : vector<8xf32> to vector<8x1xf32>
    %13 = arith.mulf %8, %8 : vector<8x256xf32>
    %cst_7 = arith.constant dense<0.000000e+00> : vector<8xf32>
    %14 = vector.multi_reduction <add>, %13, %cst_7 [1] : vector<8x256xf32> to vector<8xf32>
    %15 = vector.shape_cast %14 : vector<8xf32> to vector<8x1xf32>
    %cst_8 = arith.constant 3.906250e-03 : f32
    %16 = vector.broadcast %cst_8 : f32 to vector<8x1xf32>
    %17 = arith.mulf %12, %16 : vector<8x1xf32>
    %cst_9 = arith.constant 3.906250e-03 : f32
    %18 = vector.broadcast %cst_9 : f32 to vector<8x1xf32>
    %19 = arith.mulf %15, %18 : vector<8x1xf32>
    %20 = arith.mulf %17, %17 : vector<8x1xf32>
    %21 = arith.subf %19, %20 : vector<8x1xf32>
    %22 = vector.broadcast %17 : vector<8x1xf32> to vector<8x256xf32>
    %23 = arith.subf %8, %22 : vector<8x256xf32>
    %cst_10 = arith.constant 9.99999974E-6 : f32
    %24 = vector.broadcast %cst_10 : f32 to vector<8x1xf32>
    %25 = arith.addf %21, %24 : vector<8x1xf32>
    %26 = math.rsqrt %25 : vector<8x1xf32>
    %27 = vector.broadcast %26 : vector<8x1xf32> to vector<8x256xf32>
    %28 = arith.mulf %23, %27 : vector<8x256xf32>
    %29 = vector.broadcast %9 : vector<1x256xf32> to vector<8x256xf32>
    %30 = arith.mulf %28, %29 : vector<8x256xf32>
    %31 = vector.broadcast %10 : vector<1x256xf32> to vector<8x256xf32>
    %32 = arith.addf %30, %31 : vector<8x256xf32>
    %33 = arith.truncf %32 : vector<8x256xf32> to vector<8x256xbf16>
    %c0_11 = arith.constant 0 : index
    %c0_12 = arith.constant 0 : index
    %34 = vector.load %arg6[%c0_11, %c0_12] : memref<256x128xbf16, #tpu.memory_space<vmem>>, vector<256x128xbf16>
    %cst_13 = arith.constant dense<0.000000e+00> : vector<8x128xf32>
    %35 = tpu.matmul %33, %34, %cst_13 {dimension_numbers = #tpu.dot_dimension_numbers<[1], [0], [0], [1], [0, 0, 1, 1], [], []>} : vector<8x256xbf16>, vector<256x128xbf16>, vector<8x128xf32> -> vector<8x128xf32>
    %c0_14 = arith.constant 0 : index
    %c0_15 = arith.constant 0 : index
    %36 = vector.load %arg7[%c0_14, %c0_15] : memref<1x128xf32, #tpu.memory_space<vmem>>, vector<1x128xf32>
    %37 = vector.broadcast %36 : vector<1x128xf32> to vector<8x128xf32>
    %38 = arith.addf %35, %37 : vector<8x128xf32>
    %c0_16 = arith.constant 0 : index
    %39 = memref.load %arg0[%c0_16] : memref<1xf32, #tpu.memory_space<smem>>
    %cst_17 = arith.constant 0.000000e+00 : f32
    %40 = vector.broadcast %cst_17 : f32 to vector<8x128xf32>
    %41 = arith.cmpf oge, %38, %40 : vector<8x128xf32>
    %42 = vector.broadcast %39 : f32 to vector<8x128xf32>
    %43 = arith.mulf %42, %38 : vector<8x128xf32>
    %44 = arith.select %41, %38, %43 : vector<8x128xi1>, vector<8x128xf32>
    %45 = arith.truncf %44 : vector<8x128xf32> to vector<8x128xbf16>
    %c0_18 = arith.constant 0 : index
    %c0_19 = arith.constant 0 : index
    %46 = vector.load %arg8[%c0_18, %c0_19] : memref<128x256xbf16, #tpu.memory_space<vmem>>, vector<128x256xbf16>
    %cst_20 = arith.constant dense<0.000000e+00> : vector<8x256xf32>
    %47 = tpu.matmul %45, %46, %cst_20 {dimension_numbers = #tpu.dot_dimension_numbers<[1], [0], [0], [1], [0, 0, 1, 1], [], []>} : vector<8x128xbf16>, vector<128x256xbf16>, vector<8x256xf32> -> vector<8x256xf32>
    %c0_21 = arith.constant 0 : index
    %c0_22 = arith.constant 0 : index
    %48 = vector.load %arg9[%c0_21, %c0_22] : memref<1x256xf32, #tpu.memory_space<vmem>>, vector<1x256xf32>
    %49 = vector.broadcast %48 : vector<1x256xf32> to vector<8x256xf32>
    %50 = arith.addf %47, %49 : vector<8x256xf32>
    %51 = vector.extract_strided_slice %50 {offsets = [0, 0], sizes = [8, 128], strides = [1, 1]} : vector<8x256xf32> to vector<8x128xf32>
    %52 = vector.extract_strided_slice %50 {offsets = [0, 128], sizes = [8, 128], strides = [1, 1]} : vector<8x256xf32> to vector<8x128xf32>
    %c0_23 = arith.constant 0 : index
    %c0_24 = arith.constant 0 : index
    %53 = vector.load %arg10[%c0_23, %c0_24] : memref<1x128xf32, #tpu.memory_space<vmem>>, vector<1x128xf32>
    %c0_25 = arith.constant 0 : index
    %c0_26 = arith.constant 0 : index
    %54 = vector.load %arg11[%c0_25, %c0_26] : memref<1x128xf32, #tpu.memory_space<vmem>>, vector<1x128xf32>
    %cst_27 = arith.constant dense<0.000000e+00> : vector<8xf32>
    %55 = vector.multi_reduction <add>, %51, %cst_27 [1] : vector<8x128xf32> to vector<8xf32>
    %56 = vector.shape_cast %55 : vector<8xf32> to vector<8x1xf32>
    %57 = arith.mulf %51, %51 : vector<8x128xf32>
    %cst_28 = arith.constant dense<0.000000e+00> : vector<8xf32>
    %58 = vector.multi_reduction <add>, %57, %cst_28 [1] : vector<8x128xf32> to vector<8xf32>
    %59 = vector.shape_cast %58 : vector<8xf32> to vector<8x1xf32>
    %cst_29 = arith.constant 7.812500e-03 : f32
    %60 = vector.broadcast %cst_29 : f32 to vector<8x1xf32>
    %61 = arith.mulf %56, %60 : vector<8x1xf32>
    %cst_30 = arith.constant 7.812500e-03 : f32
    %62 = vector.broadcast %cst_30 : f32 to vector<8x1xf32>
    %63 = arith.mulf %59, %62 : vector<8x1xf32>
    %64 = arith.mulf %61, %61 : vector<8x1xf32>
    %65 = arith.subf %63, %64 : vector<8x1xf32>
    %66 = vector.broadcast %61 : vector<8x1xf32> to vector<8x128xf32>
    %67 = arith.subf %51, %66 : vector<8x128xf32>
    %cst_31 = arith.constant 9.99999974E-6 : f32
    %68 = vector.broadcast %cst_31 : f32 to vector<8x1xf32>
    %69 = arith.addf %65, %68 : vector<8x1xf32>
    %70 = math.rsqrt %69 : vector<8x1xf32>
    %71 = vector.broadcast %70 : vector<8x1xf32> to vector<8x128xf32>
    %72 = arith.mulf %67, %71 : vector<8x128xf32>
    %73 = vector.broadcast %53 : vector<1x128xf32> to vector<8x128xf32>
    %74 = arith.mulf %72, %73 : vector<8x128xf32>
    %75 = vector.broadcast %54 : vector<1x128xf32> to vector<8x128xf32>
    %76 = arith.addf %74, %75 : vector<8x128xf32>
    %c0_32 = arith.constant 0 : index
    %77 = memref.load %arg1[%c0_32] : memref<1xf32, #tpu.memory_space<smem>>
    %cst_33 = arith.constant 0.000000e+00 : f32
    %78 = vector.broadcast %cst_33 : f32 to vector<8x128xf32>
    %79 = arith.cmpf oge, %76, %78 : vector<8x128xf32>
    %80 = vector.broadcast %77 : f32 to vector<8x128xf32>
    %81 = arith.mulf %80, %76 : vector<8x128xf32>
    %82 = arith.select %79, %76, %81 : vector<8x128xi1>, vector<8x128xf32>
    %c0_34 = arith.constant 0 : index
    %c0_35 = arith.constant 0 : index
    %83 = vector.load %arg12[%c0_34, %c0_35] : memref<1x128xf32, #tpu.memory_space<vmem>>, vector<1x128xf32>
    %c0_36 = arith.constant 0 : index
    %c0_37 = arith.constant 0 : index
    %84 = vector.load %arg13[%c0_36, %c0_37] : memref<1x128xf32, #tpu.memory_space<vmem>>, vector<1x128xf32>
    %cst_38 = arith.constant dense<0.000000e+00> : vector<8xf32>
    %85 = vector.multi_reduction <add>, %52, %cst_38 [1] : vector<8x128xf32> to vector<8xf32>
    %86 = vector.shape_cast %85 : vector<8xf32> to vector<8x1xf32>
    %87 = arith.mulf %52, %52 : vector<8x128xf32>
    %cst_39 = arith.constant dense<0.000000e+00> : vector<8xf32>
    %88 = vector.multi_reduction <add>, %87, %cst_39 [1] : vector<8x128xf32> to vector<8xf32>
    %89 = vector.shape_cast %88 : vector<8xf32> to vector<8x1xf32>
    %cst_40 = arith.constant 7.812500e-03 : f32
    %90 = vector.broadcast %cst_40 : f32 to vector<8x1xf32>
    %91 = arith.mulf %86, %90 : vector<8x1xf32>
    %cst_41 = arith.constant 7.812500e-03 : f32
    %92 = vector.broadcast %cst_41 : f32 to vector<8x1xf32>
    %93 = arith.mulf %89, %92 : vector<8x1xf32>
    %94 = arith.mulf %91, %91 : vector<8x1xf32>
    %95 = arith.subf %93, %94 : vector<8x1xf32>
    %96 = vector.broadcast %91 : vector<8x1xf32> to vector<8x128xf32>
    %97 = arith.subf %52, %96 : vector<8x128xf32>
    %cst_42 = arith.constant 9.99999974E-6 : f32
    %98 = vector.broadcast %cst_42 : f32 to vector<8x1xf32>
    %99 = arith.addf %95, %98 : vector<8x1xf32>
    %100 = math.rsqrt %99 : vector<8x1xf32>
    %101 = vector.broadcast %100 : vector<8x1xf32> to vector<8x128xf32>
    %102 = arith.mulf %97, %101 : vector<8x128xf32>
    %103 = vector.broadcast %83 : vector<1x128xf32> to vector<8x128xf32>
    %104 = arith.mulf %102, %103 : vector<8x128xf32>
    %105 = vector.broadcast %84 : vector<1x128xf32> to vector<8x128xf32>
    %106 = arith.addf %104, %105 : vector<8x128xf32>
    %c0_43 = arith.constant 0 : index
    %107 = memref.load %arg2[%c0_43] : memref<1xf32, #tpu.memory_space<smem>>
    %cst_44 = arith.constant 0.000000e+00 : f32
    %108 = vector.broadcast %cst_44 : f32 to vector<8x128xf32>
    %109 = arith.cmpf oge, %106, %108 : vector<8x128xf32>
    %110 = vector.broadcast %107 : f32 to vector<8x128xf32>
    %111 = arith.mulf %110, %106 : vector<8x128xf32>
    %112 = arith.select %109, %106, %111 : vector<8x128xi1>, vector<8x128xf32>
    %113 = tpu.concatenate %82, %112 in 1 : vector<8x128xf32>, vector<8x128xf32> -> vector<8x256xf32>
    %114 = arith.truncf %113 : vector<8x256xf32> to vector<8x256xbf16>
    %c0_45 = arith.constant 0 : index
    %c0_46 = arith.constant 0 : index
    %115 = vector.load %arg14[%c0_45, %c0_46] : memref<256x128xbf16, #tpu.memory_space<vmem>>, vector<256x128xbf16>
    %cst_47 = arith.constant dense<0.000000e+00> : vector<8x128xf32>
    %116 = tpu.matmul %114, %115, %cst_47 {dimension_numbers = #tpu.dot_dimension_numbers<[1], [0], [0], [1], [0, 0, 1, 1], [], []>} : vector<8x256xbf16>, vector<256x128xbf16>, vector<8x128xf32> -> vector<8x128xf32>
    %c0_48 = arith.constant 0 : index
    %c0_49 = arith.constant 0 : index
    %117 = vector.load %arg15[%c0_48, %c0_49] : memref<1x128xf32, #tpu.memory_space<vmem>>, vector<1x128xf32>
    %118 = vector.broadcast %117 : vector<1x128xf32> to vector<8x128xf32>
    %119 = arith.addf %116, %118 : vector<8x128xf32>
    %c0_50 = arith.constant 0 : index
    %c0_51 = arith.constant 0 : index
    %120 = vector.load %arg16[%c0_50, %c0_51] : memref<8x128xf32, #tpu.memory_space<vmem>>, vector<8x128xf32>
    tpu.vector_store %arg16[%c0_50, %c0_51], %119 {strides = array<i32>} : memref<8x128xf32, #tpu.memory_space<vmem>>, vector<8x128xf32>,
    return
  }
}

</mosaic_0001>

<llo_original>
// kernel: actor_critic_forward.1
$region0: #{actor_critic_forward.1}
  #allocation0 [shape = 'u32[]', space=smem, size = 0x4, offset = 0x4, fixed_abs, tag = 'smem constant byte address 0x4 - core index']
  #allocation1 [shape = 'u32[144,128]{1,0:T(1,128)}', space=vmem, size = 0x12000, scoped, tag = 'internal scratch']
  #allocation2 [shape = 'f32[1]{0:T(128)S(6)}', space=smem, size = 0x200, scoped, tag = 'scoped memory for actor_critic_forward.1']
  #allocation3 [shape = 'f32[1]{0:T(128)S(6)}', space=smem, size = 0x200, scoped, tag = 'scoped memory for actor_critic_forward.1']
  #allocation4 [shape = 'f32[1]{0:T(128)S(6)}', space=smem, size = 0x200, scoped, tag = 'scoped memory for actor_critic_forward.1']
  %s0 = inlined_call_operand.<no memory space> [shape: f32[1], index: 0, kind: input, shape index: {}]
  %s1 = inlined_call_operand.<no memory space> [shape: f32[1], index: 1, kind: input, shape index: {}]
  %s2 = inlined_call_operand.<no memory space> [shape: f32[1], index: 2, kind: input, shape index: {}]
  %s3 = inlined_call_operand.hbm [shape: f32[8,256], index: 3, kind: input, shape index: {}]
  %s4 = inlined_call_operand.vmem [shape: f32[1,256], index: 4, kind: input, shape index: {}]
  %s5 = inlined_call_operand.vmem [shape: f32[1,256], index: 5, kind: input, shape index: {}]
  %s6 = inlined_call_operand.hbm [shape: bf16[256,128], index: 6, kind: input, shape index: {}]
  %s7 = inlined_call_operand.vmem [shape: f32[1,128], index: 7, kind: input, shape index: {}]
  %s8 = inlined_call_operand.hbm [shape: bf16[128,256], index: 8, kind: input, shape index: {}]
  %s9 = inlined_call_operand.vmem [shape: f32[1,256], index: 9, kind: input, shape index: {}]
  %s10 = inlined_call_operand.vmem [shape: f32[1,128], index: 10, kind: input, shape index: {}]
  %s11 = inlined_call_operand.vmem [shape: f32[1,128], index: 11, kind: input, shape index: {}]
  %s12 = inlined_call_operand.vmem [shape: f32[1,128], index: 12, kind: input, shape index: {}]
  %s13 = inlined_call_operand.vmem [shape: f32[1,128], index: 13, kind: input, shape index: {}]
  %s14 = inlined_call_operand.hbm [shape: bf16[256,128], index: 14, kind: input, shape index: {}]
  %s15 = inlined_call_operand.vmem [shape: f32[1,128], index: 15, kind: input, shape index: {}]
  %s16 = inlined_call_operand.vmem [shape: f32[8,128], index: 16, kind: output, shape index: {}]
  %s17 = sld [smem:[#allocation0]]
  $region90: #{actor_critic_forward.1} parent=0
    _
  %s19 = ssub.s32 1, %s17
  %s20 = scalar_select 0, %s19, %s17
  %21 = sst [smem:[#allocation2]] %s0
  %22 = sst [smem:[#allocation3]] %s1
  %23 = sst [smem:[#allocation4]] %s2
  $region1: #{actor_critic_forward.1} parent=0
    #allocation5 [shape = 'u8[8192]{0}', space=vmem, size = 0x2000, scoped, tag = 'input window, operand 3, single buffered']
    #allocation6 [shape = 's32[1]{0}', space=sflag, size = 0x4, scoped, tag = 'scoped memory for actor_critic_forward.1']
    #allocation7 [shape = 'u8[65536]{0}', space=vmem, size = 0x10000, scoped, tag = 'input window, operand 6, single buffered']
    #allocation8 [shape = 's32[1]{0}', space=sflag, size = 0x4, scoped, tag = 'scoped memory for actor_critic_forward.1']
    #allocation9 [shape = 'u8[65536]{0}', space=vmem, size = 0x10000, scoped, tag = 'input window, operand 8, single buffered']
    #allocation10 [shape = 'u8[65536]{0}', space=vmem, size = 0x10000, scoped, tag = 'input window, operand 14, single buffered']
    #allocation11 [shape = 's32[1]{0}', space=sflag, size = 0x4, scoped, tag = 'scoped memory for actor_critic_forward.1']
    %24 = vsyncpa [#allocation6], 0
    %25 = vsyncpa [#allocation8], 0
    %26 = vsyncpa [#allocation11], 0
    // Predicated region
    $region2: #{actor_critic_forward.1} parent=1 // pred_check
      _
    $region3: #{actor_critic_forward.1} parent=1 // pred_check_branch
      %28 = sbr.rel (0) target = $region5
    $region4: #{actor_critic_forward.1} parent=1 // pred_region
      _
    $region5: #{actor_critic_forward.1} parent=1 // pred_fallthru
      _
    // Predicated region
    $region6: #{actor_critic_forward.1} parent=1 // pred_check
      _
    $region7: #{actor_critic_forward.1} parent=1 // pred_check_branch
      %30 = sbr.rel (0) target = $region9
    $region8: #{actor_critic_forward.1} parent=1 // pred_region
      _
    $region9: #{actor_critic_forward.1} parent=1 // pred_fallthru
      _
    // Predicated region
    $region10: #{actor_critic_forward.1} parent=1 // pred_check
      _
    $region11: #{actor_critic_forward.1} parent=1 // pred_check_branch
      %32 = sbr.rel (0) target = $region13
    $region12: #{actor_critic_forward.1} parent=1 // pred_region
      _
    $region13: #{actor_critic_forward.1} parent=1 // pred_fallthru
      _
    // Predicated region
    $region14: #{actor_critic_forward.1} parent=1 // pred_check
      _
    $region15: #{actor_critic_forward.1} parent=1 // pred_check_branch
      %34 = sbr.rel (0) target = $region17
    $region16: #{actor_critic_forward.1} parent=1 // pred_region
      %s36 = ssub.s32 256, 256
      %37 = vsyncadd [#allocation6], %s36
      %s39 = sshll.u32 [#allocation5], 4
      %s40 = int_to_ptr.vmem [resolvable:$true] %s39
      %42 = dma.hbm_to_vmem [thread:$0]  %s3, 256, %s40, [#allocation6]
    $region17: #{actor_critic_forward.1} parent=1 // pred_fallthru
      _
    // Predicated region
    $region18: #{actor_critic_forward.1} parent=1 // pred_check
      _
    $region19: #{actor_critic_forward.1} parent=1 // pred_check_branch
      %44 = sbr.rel (0) target = $region21
    $region20: #{actor_critic_forward.1} parent=1 // pred_region
      _
    $region21: #{actor_critic_forward.1} parent=1 // pred_fallthru
      _
    // Predicated region
    $region22: #{actor_critic_forward.1} parent=1 // pred_check
      _
    $region23: #{actor_critic_forward.1} parent=1 // pred_check_branch
      %46 = sbr.rel (0) target = $region25
    $region24: #{actor_critic_forward.1} parent=1 // pred_region
      _
    $region25: #{actor_critic_forward.1} parent=1 // pred_fallthru
      _
    // Predicated region
    $region26: #{actor_critic_forward.1} parent=1 // pred_check
      _
    $region27: #{actor_critic_forward.1} parent=1 // pred_check_branch
      %48 = sbr.rel (0) target = $region29
    $region28: #{actor_critic_forward.1} parent=1 // pred_region
      %s50 = ssub.s32 2048, 2048
      %51 = vsyncadd [#allocation8], %s50
      %s52 = sshll.u32 [#allocation7], 4
      %s53 = int_to_ptr.vmem [resolvable:$true] %s52
      %58 = dma.hbm_to_vmem [thread:$0]  %s6, 2048, %s53, [#allocation8], 64, 64, 4
    $region29: #{actor_critic_forward.1} parent=1 // pred_fallthru
      _
    // Predicated region
    $region30: #{actor_critic_forward.1} parent=1 // pred_check
      _
    $region31: #{actor_critic_forward.1} parent=1 // pred_check_branch
      %60 = sbr.rel (0) target = $region33
    $region32: #{actor_critic_forward.1} parent=1 // pred_region
      _
    $region33: #{actor_critic_forward.1} parent=1 // pred_fallthru
      _
    // Predicated region
    $region34: #{actor_critic_forward.1} parent=1 // pred_check
      _
    $region35: #{actor_critic_forward.1} parent=1 // pred_check_branch
      %62 = sbr.rel (0) target = $region37
    $region36: #{actor_critic_forward.1} parent=1 // pred_region
      %s64 = ssub.s32 2048, 2048
      %65 = vsyncadd [#allocation8], %s64
      %s66 = sshll.u32 [#allocation9], 4
      %s67 = int_to_ptr.vmem [resolvable:$true] %s66
      %72 = dma.hbm_to_vmem [thread:$0]  %s8, 2048, %s67, [#allocation8], 128, 128, 8
    $region37: #{actor_critic_forward.1} parent=1 // pred_fallthru
      _
    // Predicated region
    $region38: #{actor_critic_forward.1} parent=1 // pred_check
      _
    $region39: #{actor_critic_forward.1} parent=1 // pred_check_branch
      %74 = sbr.rel (0) target = $region41
    $region40: #{actor_critic_forward.1} parent=1 // pred_region
      _
    $region41: #{actor_critic_forward.1} parent=1 // pred_fallthru
      _
    // Predicated region
    $region42: #{actor_critic_forward.1} parent=1 // pred_check
      _
    $region43: #{actor_critic_forward.1} parent=1 // pred_check_branch
      %76 = sbr.rel (0) target = $region45
    $region44: #{actor_critic_forward.1} parent=1 // pred_region
      _
    $region45: #{actor_critic_forward.1} parent=1 // pred_fallthru
      _
    // Predicated region
    $region46: #{actor_critic_forward.1} parent=1 // pred_check
      _
    $region47: #{actor_critic_forward.1} parent=1 // pred_check_branch
      %78 = sbr.rel (0) target = $region49
    $region48: #{actor_critic_forward.1} parent=1 // pred_region
      _
    $region49: #{actor_critic_forward.1} parent=1 // pred_fallthru
      _
    // Predicated region
    $region50: #{actor_critic_forward.1} parent=1 // pred_check
      _
    $region51: #{actor_critic_forward.1} parent=1 // pred_check_branch
      %80 = sbr.rel (0) target = $region53
    $region52: #{actor_critic_forward.1} parent=1 // pred_region
      _
    $region53: #{actor_critic_forward.1} parent=1 // pred_fallthru
      _
    // Predicated region
    $region54: #{actor_critic_forward.1} parent=1 // pred_check
      _
    $region55: #{actor_critic_forward.1} parent=1 // pred_check_branch
      %82 = sbr.rel (0) target = $region57
    $region56: #{actor_critic_forward.1} parent=1 // pred_region
      _
    $region57: #{actor_critic_forward.1} parent=1 // pred_fallthru
      _
    // Predicated region
    $region58: #{actor_critic_forward.1} parent=1 // pred_check
      _
    $region59: #{actor_critic_forward.1} parent=1 // pred_check_branch
      %84 = sbr.rel (0) target = $region61
    $region60: #{actor_critic_forward.1} parent=1 // pred_region
      %s86 = ssub.s32 2048, 2048
      %87 = vsyncadd [#allocation11], %s86
      %s88 = sshll.u32 [#allocation10], 4
      %s89 = int_to_ptr.vmem [resolvable:$true] %s88
      %94 = dma.hbm_to_vmem [thread:$0]  %s14, 2048, %s89, [#allocation11], 64, 64, 4
    $region61: #{actor_critic_forward.1} parent=1 // pred_fallthru
      _
    // Predicated region
    $region62: #{actor_critic_forward.1} parent=1 // pred_check
      _
    $region63: #{actor_critic_forward.1} parent=1 // pred_check_branch
      %96 = sbr.rel (0) target = $region65
    $region64: #{actor_critic_forward.1} parent=1 // pred_region
      _
    $region65: #{actor_critic_forward.1} parent=1 // pred_fallthru
      _
    // Predicated region
    $region66: #{actor_critic_forward.1} parent=1 // pred_check
      _
    $region67: #{actor_critic_forward.1} parent=1 // pred_check_branch
      %98 = sbr.rel (0) target = $region69
    $region68: #{actor_critic_forward.1} parent=1 // pred_region
      %99 = dma.done [#allocation6], 256
    $region69: #{actor_critic_forward.1} parent=1 // pred_fallthru
      _
    // Predicated region
    $region70: #{actor_critic_forward.1} parent=1 // pred_check
      _
    $region71: #{actor_critic_forward.1} parent=1 // pred_check_branch
      %101 = sbr.rel (0) target = $region73
    $region72: #{actor_critic_forward.1} parent=1 // pred_region
      %102 = dma.done [#allocation8], 2048
    $region73: #{actor_critic_forward.1} parent=1 // pred_fallthru
      _
    // Predicated region
    $region74: #{actor_critic_forward.1} parent=1 // pred_check
      _
    $region75: #{actor_critic_forward.1} parent=1 // pred_check_branch
      %104 = sbr.rel (0) target = $region77
    $region76: #{actor_critic_forward.1} parent=1 // pred_region
      %105 = dma.done [#allocation8], 2048
    $region77: #{actor_critic_forward.1} parent=1 // pred_fallthru
      _
    // Predicated region
    $region78: #{actor_critic_forward.1} parent=1 // pred_check
      _
    $region79: #{actor_critic_forward.1} parent=1 // pred_check_branch
      %107 = sbr.rel (0) target = $region81
    $region80: #{actor_critic_forward.1} parent=1 // pred_region
      %108 = dma.done [#allocation11], 2048
    $region81: #{actor_critic_forward.1} parent=1 // pred_fallthru
      _
    %v110 = vld [vmem:[#allocation5] sm:$0xff]
    %v111 = vld [vmem:[#allocation5 + $0x8] sm:$0xff]
    %v112 = vmul.f32 %v110, %v110
    %v113 = vmul.f32 %v111, %v111
    %v114 = vadd.f32 %v112, %v113
    %115 = vadd.xlane.f32.xlu0 %v114
    %v116 = vpop.xlane.xlu0 %115
    %v117 = vmax.f32 %v116, 1e-24
    %v118 = vrsqrt.pop %v117
    %v119 = vmul.f32 %v110, %v118
    %v120 = vmul.f32 %v111, %v118
    %v121 = vld [vmem:[%s4] sm:$0x3]
    %v122 = vld [vmem:[%s5] sm:$0x3]
    %v123 = vadd.f32 %v119, %v120
    %124 = vadd.xlane.f32.xlu0 %v123
    %v125 = vpop.xlane.xlu0 %124
    %v126 = vmul.f32 %v119, %v119
    %v127 = vmul.f32 %v120, %v120
    %v128 = vadd.f32 %v126, %v127
    %129 = vadd.xlane.f32.xlu0 %v128
    %v130 = vpop.xlane.xlu0 %129
    %v131 = vmul.f32 %v125, 0.00390625
    %v132 = vmul.f32 %v130, 0.00390625
    %v133 = vmul.f32 %v131, %v131
    %v134 = vsub.f32 %v132, %v133
    %v135 = vsub.f32 %v119, %v131
    %v136 = vsub.f32 %v120, %v131
    %v137 = vadd.f32 %v134, 1e-05
    %v138 = vrsqrt.pop %v137
    %v139 = vmul.f32 %v135, %v138
    %v140 = vmul.f32 %v136, %v138
    %v142 = vlaneseq
    %v143 = vshrl.u32 %v142, 7
    %v144 = vsub.s32 0, %v143
    %v145 = vrot.slane %v121, %v144
    %v146 = vlaneseq
    %v147 = vshrl.u32 %v146, 7
    %v148 = vsub.s32 1, %v147
    %v149 = vrot.slane %v121, %v148
    %v152 = vmul.f32 %v139, %v145
    %v153 = vmul.f32 %v140, %v149
    %v155 = vlaneseq
    %v156 = vshrl.u32 %v155, 7
    %v157 = vsub.s32 0, %v156
    %v158 = vrot.slane %v122, %v157
    %v159 = vlaneseq
    %v160 = vshrl.u32 %v159, 7
    %v161 = vsub.s32 1, %v160
    %v162 = vrot.slane %v122, %v161
    %v165 = vadd.f32 %v152, %v158
    %v166 = vadd.f32 %v153, %v162
    %v167 = vpack.c.bf16 %v165, %v165
    %v168 = vpack.c.bf16 %v166, %v166
    %v169 = vld [vmem:[#allocation7] sm:$0xf]
    %v170 = vld [vmem:[#allocation7 + $0x4] sm:$0xf]
    %v171 = vld [vmem:[#allocation7 + $0x8] sm:$0xf]
    %v172 = vld [vmem:[#allocation7 + $0xc] sm:$0xf]
    %v173 = vld [vmem:[#allocation7 + $0x10] sm:$0xf]
    %v174 = vld [vmem:[#allocation7 + $0x14] sm:$0xf]
    %v175 = vld [vmem:[#allocation7 + $0x18] sm:$0xf]
    %v176 = vld [vmem:[#allocation7 + $0x1c] sm:$0xf]
    %v177 = vld [vmem:[#allocation7 + $0x20] sm:$0xf]
    %v178 = vld [vmem:[#allocation7 + $0x24] sm:$0xf]
    %v179 = vld [vmem:[#allocation7 + $0x28] sm:$0xf]
    %v180 = vld [vmem:[#allocation7 + $0x2c] sm:$0xf]
    %v181 = vld [vmem:[#allocation7 + $0x30] sm:$0xf]
    %v182 = vld [vmem:[#allocation7 + $0x34] sm:$0xf]
    %v183 = vld [vmem:[#allocation7 + $0x38] sm:$0xf]
    %v184 = vld [vmem:[#allocation7 + $0x3c] sm:$0xf]
    %v185 = vld [vmem:[#allocation7 + $0x40] sm:$0xf]
    %v186 = vld [vmem:[#allocation7 + $0x44] sm:$0xf]
    %v187 = vld [vmem:[#allocation7 + $0x48] sm:$0xf]
    %v188 = vld [vmem:[#allocation7 + $0x4c] sm:$0xf]
    %v189 = vld [vmem:[#allocation7 + $0x50] sm:$0xf]
    %v190 = vld [vmem:[#allocation7 + $0x54] sm:$0xf]
    %v191 = vld [vmem:[#allocation7 + $0x58] sm:$0xf]
    %v192 = vld [vmem:[#allocation7 + $0x5c] sm:$0xf]
    %v193 = vld [vmem:[#allocation7 + $0x60] sm:$0xf]
    %v194 = vld [vmem:[#allocation7 + $0x64] sm:$0xf]
    %v195 = vld [vmem:[#allocation7 + $0x68] sm:$0xf]
    %v196 = vld [vmem:[#allocation7 + $0x6c] sm:$0xf]
    %v197 = vld [vmem:[#allocation7 + $0x70] sm:$0xf]
    %v198 = vld [vmem:[#allocation7 + $0x74] sm:$0xf]
    %v199 = vld [vmem:[#allocation7 + $0x78] sm:$0xf]
    %v200 = vld [vmem:[#allocation7 + $0x7c] sm:$0xf]
    %v201 = vld [vmem:[%s7] sm:$0x1]
    %v203 = vlaneseq
    %v204 = vshrl.u32 %v203, 7
    %v205 = vsub.s32 0, %v204
    %v206 = vrot.slane %v201, %v205
    %v240 = vunpack.c.l.b16 %v169
    %v241 = vunpack.c.l.b16 %v170
    %v242 = vunpack.c.l.b16 %v171
    %v243 = vunpack.c.l.b16 %v172
    %v244 = vunpack.c.l.b16 %v173
    %v245 = vunpack.c.l.b16 %v174
    %v246 = vunpack.c.l.b16 %v175
    %v247 = vunpack.c.l.b16 %v176
    %v248 = vunpack.c.l.b16 %v177
    %v249 = vunpack.c.l.b16 %v178
    %v250 = vunpack.c.l.b16 %v179
    %v251 = vunpack.c.l.b16 %v180
    %v252 = vunpack.c.l.b16 %v181
    %v253 = vunpack.c.l.b16 %v182
    %v254 = vunpack.c.l.b16 %v183
    %v255 = vunpack.c.l.b16 %v184
    %v256 = vunpack.c.l.b16 %v185
    %v257 = vunpack.c.l.b16 %v186
    %v258 = vunpack.c.l.b16 %v187
    %v259 = vunpack.c.l.b16 %v188
    %v260 = vunpack.c.l.b16 %v189
    %v261 = vunpack.c.l.b16 %v190
    %v262 = vunpack.c.l.b16 %v191
    %v263 = vunpack.c.l.b16 %v192
    %v264 = vunpack.c.l.b16 %v193
    %v265 = vunpack.c.l.b16 %v194
    %v266 = vunpack.c.l.b16 %v195
    %v267 = vunpack.c.l.b16 %v196
    %v268 = vunpack.c.l.b16 %v197
    %v269 = vunpack.c.l.b16 %v198
    %v270 = vunpack.c.l.b16 %v199
    %v271 = vunpack.c.l.b16 %v200
    %v272 = vpack.c.b16 %v241, %v240
    %v273 = vpack.c.b16 %v243, %v242
    %v274 = vpack.c.b16 %v245, %v244
    %v275 = vpack.c.b16 %v247, %v246
    %v276 = vpack.c.b16 %v249, %v248
    %v277 = vpack.c.b16 %v251, %v250
    %v278 = vpack.c.b16 %v253, %v252
    %v279 = vpack.c.b16 %v255, %v254
    %v280 = vpack.c.b16 %v257, %v256
    %v281 = vpack.c.b16 %v259, %v258
    %v282 = vpack.c.b16 %v261, %v260
    %v283 = vpack.c.b16 %v263, %v262
    %v284 = vpack.c.b16 %v265, %v264
    %v285 = vpack.c.b16 %v267, %v266
    %v286 = vpack.c.b16 %v269, %v268
    %v287 = vpack.c.b16 %v271, %v270
    %304 = vmatprep.subr.bf16.mxu0 0
    %305 = vmatpush1.bf16.msra.mxu0 %v279
    %306 = vmatprep.subr.bf16.mxu0 0
    %307 = vmatpush1.bf16.msra.mxu0 %v278
    %308 = vmatprep.subr.bf16.mxu0 0
    %309 = vmatpush1.bf16.msra.mxu0 %v277
    %310 = vmatprep.subr.bf16.mxu0 0
    %311 = vmatpush1.bf16.msra.mxu0 %v276
    %312 = vmatprep.subr.bf16.mxu0 0
    %313 = vmatpush1.bf16.msra.mxu0 %v275
    %314 = vmatprep.subr.bf16.mxu0 0
    %315 = vmatpush1.bf16.msra.mxu0 %v274
    %316 = vmatprep.subr.bf16.mxu0 0
    %317 = vmatpush1.bf16.msra.mxu0 %v273
    %318 = vmatprep.subr.bf16.mxu0 0
    %319 = vmatpush1.bf16.msra.mxu0 %v272
    %320 = vmatprep.subr.bf16.mxu0 0
    %321 = vmatpush2.bf16.msra.mxu0 %v287
    %322 = vmatprep.subr.bf16.mxu0 0
    %323 = vmatpush2.bf16.msra.mxu0 %v286
    %324 = vmatprep.subr.bf16.mxu0 0
    %325 = vmatpush2.bf16.msra.mxu0 %v285
    %326 = vmatprep.subr.bf16.mxu0 0
    %327 = vmatpush2.bf16.msra.mxu0 %v284
    %328 = vmatprep.subr.bf16.mxu0 0
    %329 = vmatpush2.bf16.msra.mxu0 %v283
    %330 = vmatprep.subr.bf16.mxu0 0
    %331 = vmatpush2.bf16.msra.mxu0 %v282
    %332 = vmatprep.subr.bf16.mxu0 0
    %333 = vmatpush2.bf16.msra.mxu0 %v281
    %334 = vmatprep.subr.bf16.mxu0 0
    %335 = vmatpush2.bf16.msra.mxu0 %v280
    %336 = vmatprep.mubr.bf16.mxu0 %v168
    %337 = vmatmul.mubr.bf16.gmra.mxu0 %v167
    %v338 = vpop.f32.mrf.mxu0
    %v339 = vadd.f32 %v206, %v338
    %v340 = vpop.f32.mrf.mxu0
    %v341 = vpop.f32.mrf.mxu0
    %v342 = vpop.f32.mrf.mxu0
    %343 = vdwg.mxu0
    %s344 = sld [smem:[#allocation2]]
    %vm345 = vcmp.ge.f32.partialorder %v339, 0.0
    %v346 = vstv %s344
    %v347 = vmul.f32 %v346, %v339
    %v348 = vsel %vm345, %v339, %v347
    %v349 = vpack.c.bf16 %v348, %v348
    %v350 = vld [vmem:[#allocation9] sm:$0xff]
    %v351 = vld [vmem:[#allocation9 + $0x8] sm:$0xff]
    %v352 = vld [vmem:[#allocation9 + $0x10] sm:$0xff]
    %v353 = vld [vmem:[#allocation9 + $0x18] sm:$0xff]
    %v354 = vld [vmem:[#allocation9 + $0x20] sm:$0xff]
    %v355 = vld [vmem:[#allocation9 + $0x28] sm:$0xff]
    %v356 = vld [vmem:[#allocation9 + $0x30] sm:$0xff]
    %v357 = vld [vmem:[#allocation9 + $0x38] sm:$0xff]
    %v358 = vld [vmem:[#allocation9 + $0x40] sm:$0xff]
    %v359 = vld [vmem:[#allocation9 + $0x48] sm:$0xff]
    %v360 = vld [vmem:[#allocation9 + $0x50] sm:$0xff]
    %v361 = vld [vmem:[#allocation9 + $0x58] sm:$0xff]
    %v362 = vld [vmem:[#allocation9 + $0x60] sm:$0xff]
    %v363 = vld [vmem:[#allocation9 + $0x68] sm:$0xff]
    %v364 = vld [vmem:[#allocation9 + $0x70] sm:$0xff]
    %v365 = vld [vmem:[#allocation9 + $0x78] sm:$0xff]
    %v366 = vld [vmem:[%s9] sm:$0x3]
    %v368 = vlaneseq
    %v369 = vshrl.u32 %v368, 7
    %v370 = vsub.s32 0, %v369
    %v371 = vrot.slane %v366, %v370
    %v372 = vlaneseq
    %v373 = vshrl.u32 %v372, 7
    %v374 = vsub.s32 1, %v373
    %v375 = vrot.slane %v366, %v374
    %v394 = vunpack.c.l.b16 %v350
    %v395 = vunpack.c.h.b16 %v350
    %v396 = vunpack.c.l.b16 %v351
    %v397 = vunpack.c.h.b16 %v351
    %v398 = vunpack.c.l.b16 %v352
    %v399 = vunpack.c.h.b16 %v352
    %v400 = vunpack.c.l.b16 %v353
    %v401 = vunpack.c.h.b16 %v353
    %v402 = vunpack.c.l.b16 %v354
    %v403 = vunpack.c.h.b16 %v354
    %v404 = vunpack.c.l.b16 %v355
    %v405 = vunpack.c.h.b16 %v355
    %v406 = vunpack.c.l.b16 %v356
    %v407 = vunpack.c.h.b16 %v356
    %v408 = vunpack.c.l.b16 %v357
    %v409 = vunpack.c.h.b16 %v357
    %v410 = vunpack.c.l.b16 %v358
    %v411 = vunpack.c.h.b16 %v358
    %v412 = vunpack.c.l.b16 %v359
    %v413 = vunpack.c.h.b16 %v359
    %v414 = vunpack.c.l.b16 %v360
    %v415 = vunpack.c.h.b16 %v360
    %v416 = vunpack.c.l.b16 %v361
    %v417 = vunpack.c.h.b16 %v361
    %v418 = vunpack.c.l.b16 %v362
    %v419 = vunpack.c.h.b16 %v362
    %v420 = vunpack.c.l.b16 %v363
    %v421 = vunpack.c.h.b16 %v363
    %v422 = vunpack.c.l.b16 %v364
    %v423 = vunpack.c.h.b16 %v364
    %v424 = vunpack.c.l.b16 %v365
    %v425 = vunpack.c.h.b16 %v365
    %v426 = vpack.c.b16 %v396, %v394
    %v427 = vpack.c.b16 %v397, %v395
    %v428 = vpack.c.b16 %v400, %v398
    %v429 = vpack.c.b16 %v401, %v399
    %v430 = vpack.c.b16 %v404, %v402
    %v431 = vpack.c.b16 %v405, %v403
    %v432 = vpack.c.b16 %v408, %v406
    %v433 = vpack.c.b16 %v409, %v407
    %v434 = vpack.c.b16 %v412, %v410
    %v435 = vpack.c.b16 %v413, %v411
    %v436 = vpack.c.b16 %v416, %v414
    %v437 = vpack.c.b16 %v417, %v415
    %v438 = vpack.c.b16 %v420, %v418
    %v439 = vpack.c.b16 %v421, %v419
    %v440 = vpack.c.b16 %v424, %v422
    %v441 = vpack.c.b16 %v425, %v423
    %458 = vmatprep.subr.bf16.mxu0 %v441
    %459 = vmatpush1.bf16.msra.mxu0 %v440
    %460 = vmatprep.subr.bf16.mxu0 %v439
    %461 = vmatpush1.bf16.msra.mxu0 %v438
    %462 = vmatprep.subr.bf16.mxu0 %v437
    %463 = vmatpush1.bf16.msra.mxu0 %v436
    %464 = vmatprep.subr.bf16.mxu0 %v435
    %465 = vmatpush1.bf16.msra.mxu0 %v434
    %466 = vmatprep.subr.bf16.mxu0 %v433
    %467 = vmatpush1.bf16.msra.mxu0 %v432
    %468 = vmatprep.subr.bf16.mxu0 %v431
    %469 = vmatpush1.bf16.msra.mxu0 %v430
    %470 = vmatprep.subr.bf16.mxu0 %v429
    %471 = vmatpush1.bf16.msra.mxu0 %v428
    %472 = vmatprep.subr.bf16.mxu0 %v427
    %473 = vmatpush1.bf16.msra.mxu0 %v426
    %474 = vmatprep.subr.bf16.mxu0 0
    %475 = vmatpush2.bf16.msra.mxu0 0
    %476 = vmatprep.subr.bf16.mxu0 0
    %477 = vmatpush2.bf16.msra.mxu0 0
    %478 = vmatprep.subr.bf16.mxu0 0
    %479 = vmatpush2.bf16.msra.mxu0 0
    %480 = vmatprep.subr.bf16.mxu0 0
    %481 = vmatpush2.bf16.msra.mxu0 0
    %482 = vmatprep.subr.bf16.mxu0 0
    %483 = vmatpush2.bf16.msra.mxu0 0
    %484 = vmatprep.subr.bf16.mxu0 0
    %485 = vmatpush2.bf16.msra.mxu0 0
    %486 = vmatprep.subr.bf16.mxu0 0
    %487 = vmatpush2.bf16.msra.mxu0 0
    %488 = vmatprep.subr.bf16.mxu0 0
    %489 = vmatpush2.bf16.msra.mxu0 0
    %490 = vmatprep.mubr.bf16.mxu0 0
    %491 = vmatmul.mubr.bf16.gmra.mxu0 %v349
    %v492 = vpop.f32.mrf.mxu0
    %v493 = vadd.f32 %v371, %v492
    %v494 = vpop.f32.mrf.mxu0
    %v495 = vadd.f32 %v375, %v494
    %v496 = vpop.f32.mrf.mxu0
    %v497 = vpop.f32.mrf.mxu0
    %498 = vdwg.mxu0
    %v499 = vld [vmem:[%s10] sm:$0x1]
    %v500 = vld [vmem:[%s11] sm:$0x1]
    %501 = vadd.xlane.f32.xlu0 %v493
    %v502 = vpop.xlane.xlu0 %501
    %v503 = vmul.f32 %v493, %v493
    %504 = vadd.xlane.f32.xlu0 %v503
    %v505 = vpop.xlane.xlu0 %504
    %v506 = vmul.f32 %v502, 0.0078125
    %v507 = vmul.f32 %v505, 0.0078125
    %v508 = vmul.f32 %v506, %v506
    %v509 = vsub.f32 %v507, %v508
    %v510 = vsub.f32 %v493, %v506
    %v511 = vadd.f32 %v509, 1e-05
    %v512 = vrsqrt.pop %v511
    %v513 = vmul.f32 %v510, %v512
    %v515 = vlaneseq
    %v516 = vshrl.u32 %v515, 7
    %v517 = vsub.s32 0, %v516
    %v518 = vrot.slane %v499, %v517
    %v520 = vmul.f32 %v513, %v518
    %v522 = vlaneseq
    %v523 = vshrl.u32 %v522, 7
    %v524 = vsub.s32 0, %v523
    %v525 = vrot.slane %v500, %v524
    %v527 = vadd.f32 %v520, %v525
    %s528 = sld [smem:[#allocation3]]
    %vm529 = vcmp.ge.f32.partialorder %v527, 0.0
    %v530 = vstv %s528
    %v531 = vmul.f32 %v530, %v527
    %v532 = vsel %vm529, %v527, %v531
    %v533 = vld [vmem:[%s12] sm:$0x1]
    %v534 = vld [vmem:[%s13] sm:$0x1]
    %535 = vadd.xlane.f32.xlu0 %v495
    %v536 = vpop.xlane.xlu0 %535
    %v537 = vmul.f32 %v495, %v495
    %538 = vadd.xlane.f32.xlu0 %v537
    %v539 = vpop.xlane.xlu0 %538
    %v540 = vmul.f32 %v536, 0.0078125
    %v541 = vmul.f32 %v539, 0.0078125
    %v542 = vmul.f32 %v540, %v540
    %v543 = vsub.f32 %v541, %v542
    %v544 = vsub.f32 %v495, %v540
    %v545 = vadd.f32 %v543, 1e-05
    %v546 = vrsqrt.pop %v545
    %v547 = vmul.f32 %v544, %v546
    %v549 = vlaneseq
    %v550 = vshrl.u32 %v549, 7
    %v551 = vsub.s32 0, %v550
    %v552 = vrot.slane %v533, %v551
    %v554 = vmul.f32 %v547, %v552
    %v556 = vlaneseq
    %v557 = vshrl.u32 %v556, 7
    %v558 = vsub.s32 0, %v557
    %v559 = vrot.slane %v534, %v558
    %v561 = vadd.f32 %v554, %v559
    %s562 = sld [smem:[#allocation4]]
    %vm563 = vcmp.ge.f32.partialorder %v561, 0.0
    %v564 = vstv %s562
    %v565 = vmul.f32 %v564, %v561
    %v566 = vsel %vm563, %v561, %v565
    %v567 = vpack.c.bf16 %v532, %v532
    %v568 = vpack.c.bf16 %v566, %v566
    %v569 = vld [vmem:[#allocation10] sm:$0xf]
    %v570 = vld [vmem:[#allocation10 + $0x4] sm:$0xf]
    %v571 = vld [vmem:[#allocation10 + $0x8] sm:$0xf]
    %v572 = vld [vmem:[#allocation10 + $0xc] sm:$0xf]
    %v573 = vld [vmem:[#allocation10 + $0x10] sm:$0xf]
    %v574 = vld [vmem:[#allocation10 + $0x14] sm:$0xf]
    %v575 = vld [vmem:[#allocation10 + $0x18] sm:$0xf]
    %v576 = vld [vmem:[#allocation10 + $0x1c] sm:$0xf]
    %v577 = vld [vmem:[#allocation10 + $0x20] sm:$0xf]
    %v578 = vld [vmem:[#allocation10 + $0x24] sm:$0xf]
    %v579 = vld [vmem:[#allocation10 + $0x28] sm:$0xf]
    %v580 = vld [vmem:[#allocation10 + $0x2c] sm:$0xf]
    %v581 = vld [vmem:[#allocation10 + $0x30] sm:$0xf]
    %v582 = vld [vmem:[#allocation10 + $0x34] sm:$0xf]
    %v583 = vld [vmem:[#allocation10 + $0x38] sm:$0xf]
    %v584 = vld [vmem:[#allocation10 + $0x3c] sm:$0xf]
    %v585 = vld [vmem:[#allocation10 + $0x40] sm:$0xf]
    %v586 = vld [vmem:[#allocation10 + $0x44] sm:$0xf]
    %v587 = vld [vmem:[#allocation10 + $0x48] sm:$0xf]
    %v588 = vld [vmem:[#allocation10 + $0x4c] sm:$0xf]
    %v589 = vld [vmem:[#allocation10 + $0x50] sm:$0xf]
    %v590 = vld [vmem:[#allocation10 + $0x54] sm:$0xf]
    %v591 = vld [vmem:[#allocation10 + $0x58] sm:$0xf]
    %v592 = vld [vmem:[#allocation10 + $0x5c] sm:$0xf]
    %v593 = vld [vmem:[#allocation10 + $0x60] sm:$0xf]
    %v594 = vld [vmem:[#allocation10 + $0x64] sm:$0xf]
    %v595 = vld [vmem:[#allocation10 + $0x68] sm:$0xf]
    %v596 = vld [vmem:[#allocation10 + $0x6c] sm:$0xf]
    %v597 = vld [vmem:[#allocation10 + $0x70] sm:$0xf]
    %v598 = vld [vmem:[#allocation10 + $0x74] sm:$0xf]
    %v599 = vld [vmem:[#allocation10 + $0x78] sm:$0xf]
    %v600 = vld [vmem:[#allocation10 + $0x7c] sm:$0xf]
    %v601 = vld [vmem:[%s15] sm:$0x1]
    %v603 = vlaneseq
    %v604 = vshrl.u32 %v603, 7
    %v605 = vsub.s32 0, %v604
    %v606 = vrot.slane %v601, %v605
    %v640 = vunpack.c.l.b16 %v569
    %v641 = vunpack.c.l.b16 %v570
    %v642 = vunpack.c.l.b16 %v571
    %v643 = vunpack.c.l.b16 %v572
    %v644 = vunpack.c.l.b16 %v573
    %v645 = vunpack.c.l.b16 %v574
    %v646 = vunpack.c.l.b16 %v575
    %v647 = vunpack.c.l.b16 %v576
    %v648 = vunpack.c.l.b16 %v577
    %v649 = vunpack.c.l.b16 %v578
    %v650 = vunpack.c.l.b16 %v579
    %v651 = vunpack.c.l.b16 %v580
    %v652 = vunpack.c.l.b16 %v581
    %v653 = vunpack.c.l.b16 %v582
    %v654 = vunpack.c.l.b16 %v583
    %v655 = vunpack.c.l.b16 %v584
    %v656 = vunpack.c.l.b16 %v585
    %v657 = vunpack.c.l.b16 %v586
    %v658 = vunpack.c.l.b16 %v587
    %v659 = vunpack.c.l.b16 %v588
    %v660 = vunpack.c.l.b16 %v589
    %v661 = vunpack.c.l.b16 %v590
    %v662 = vunpack.c.l.b16 %v591
    %v663 = vunpack.c.l.b16 %v592
    %v664 = vunpack.c.l.b16 %v593
    %v665 = vunpack.c.l.b16 %v594
    %v666 = vunpack.c.l.b16 %v595
    %v667 = vunpack.c.l.b16 %v596
    %v668 = vunpack.c.l.b16 %v597
    %v669 = vunpack.c.l.b16 %v598
    %v670 = vunpack.c.l.b16 %v599
    %v671 = vunpack.c.l.b16 %v600
    %v672 = vpack.c.b16 %v641, %v640
    %v673 = vpack.c.b16 %v643, %v642
    %v674 = vpack.c.b16 %v645, %v644
    %v675 = vpack.c.b16 %v647, %v646
    %v676 = vpack.c.b16 %v649, %v648
    %v677 = vpack.c.b16 %v651, %v650
    %v678 = vpack.c.b16 %v653, %v652
    %v679 = vpack.c.b16 %v655, %v654
    %v680 = vpack.c.b16 %v657, %v656
    %v681 = vpack.c.b16 %v659, %v658
    %v682 = vpack.c.b16 %v661, %v660
    %v683 = vpack.c.b16 %v663, %v662
    %v684 = vpack.c.b16 %v665, %v664
    %v685 = vpack.c.b16 %v667, %v666
    %v686 = vpack.c.b16 %v669, %v668
    %v687 = vpack.c.b16 %v671, %v670
    %704 = vmatprep.subr.bf16.mxu0 0
    %705 = vmatpush1.bf16.msra.mxu0 %v679
    %706 = vmatprep.subr.bf16.mxu0 0
    %707 = vmatpush1.bf16.msra.mxu0 %v678
    %708 = vmatprep.subr.bf16.mxu0 0
    %709 = vmatpush1.bf16.msra.mxu0 %v677
    %710 = vmatprep.subr.bf16.mxu0 0
    %711 = vmatpush1.bf16.msra.mxu0 %v676
    %712 = vmatprep.subr.bf16.mxu0 0
    %713 = vmatpush1.bf16.msra.mxu0 %v675
    %714 = vmatprep.subr.bf16.mxu0 0
    %715 = vmatpush1.bf16.msra.mxu0 %v674
    %716 = vmatprep.subr.bf16.mxu0 0
    %717 = vmatpush1.bf16.msra.mxu0 %v673
    %718 = vmatprep.subr.bf16.mxu0 0
    %719 = vmatpush1.bf16.msra.mxu0 %v672
    %720 = vmatprep.subr.bf16.mxu0 0
    %721 = vmatpush2.bf16.msra.mxu0 %v687
    %722 = vmatprep.subr.bf16.mxu0 0
    %723 = vmatpush2.bf16.msra.mxu0 %v686
    %724 = vmatprep.subr.bf16.mxu0 0
    %725 = vmatpush2.bf16.msra.mxu0 %v685
    %726 = vmatprep.subr.bf16.mxu0 0
    %727 = vmatpush2.bf16.msra.mxu0 %v684
    %728 = vmatprep.subr.bf16.mxu0 0
    %729 = vmatpush2.bf16.msra.mxu0 %v683
    %730 = vmatprep.subr.bf16.mxu0 0
    %731 = vmatpush2.bf16.msra.mxu0 %v682
    %732 = vmatprep.subr.bf16.mxu0 0
    %733 = vmatpush2.bf16.msra.mxu0 %v681
    %734 = vmatprep.subr.bf16.mxu0 0
    %735 = vmatpush2.bf16.msra.mxu0 %v680
    %736 = vmatprep.mubr.bf16.mxu0 %v568
    %737 = vmatmul.mubr.bf16.gmra.mxu0 %v567
    %v738 = vpop.f32.mrf.mxu0
    %v739 = vadd.f32 %v606, %v738
    %v740 = vpop.f32.mrf.mxu0
    %v741 = vpop.f32.mrf.mxu0
    %v742 = vpop.f32.mrf.mxu0
    %743 = vdwg.mxu0
    %744 = vst [vmem:[%s16] sm:$0xff] %v739
    // Predicated region
    $region82: #{actor_critic_forward.1} parent=1 // pred_check
      _
    $region83: #{actor_critic_forward.1} parent=1 // pred_check_branch
      %746 = sbr.rel (0) target = $region85
    $region84: #{actor_critic_forward.1} parent=1 // pred_region
      _
    $region85: #{actor_critic_forward.1} parent=1 // pred_fallthru
      _
    // Predicated region
    $region86: #{actor_critic_forward.1} parent=1 // pred_check
      _
    $region87: #{actor_critic_forward.1} parent=1 // pred_check_branch
      %748 = sbr.rel (0) target = $region89
    $region88: #{actor_critic_forward.1} parent=1 // pred_region
      _
    $region89: #{actor_critic_forward.1} parent=1 // pred_fallthru
      _
    %749 = vsyncpa [#allocation6], 1
    %750 = vsyncpa [#allocation8], 1
    %751 = vsyncpa [#allocation11], 1

</llo_original>
